<compile_context>
chip_gen: v7x
topology: tpu7x:2x2x1
jax: 0.10.0
libtpu: 0.0.40
codegen_flags: <defaults>
</compile_context>

<pallas_src>
import jax
import jax.numpy as jnp
from jax import lax
from jax.experimental import pallas as pl
from jax.experimental.pallas import tpu as pltpu


# --------------------------------------------------------------------------- helpers
def _round_up(x: int, m: int) -> int:
    return ((x + m - 1) // m) * m


def _pick_tile(n: int, target: int = 2048) -> int:
    """Largest Lo tile <= target that is either the full extent or a 128-multiple
    dividing n (the tile is the LAST dim of the pass-2 output block, so it must be
    lane-aligned unless it covers the whole axis)."""
    if n <= target:
        return n
    for t in range(target - target % 128, 127, -128):
        if n % t == 0:
            return t
    return n


def _vmem_limit_bytes(per_step_bytes: int) -> int:
    """Generation-aware VMEM budget: double-buffered blocks + headroom, capped at
    ~60% of physical VMEM (64 MiB on v7x, 128 MiB on v5e/v6e)."""
    cap = 64 * 2**20  # conservative fallback = v7x per-core VMEM
    try:
        cap = int(getattr(pltpu.get_tpu_info(), "vmem_capacity_bytes", cap))
    except Exception:
        pass
    need = 2 * per_step_bytes + (4 << 20)
    return int(min(0.6 * cap, max(16 << 20, need)))


# --------------------------------------------------------------------------- pass 1
def _conv_stats_kernel(x_ref, w_ref, b_ref, y_ref, stats_ref):
    """Conv1d(k=3, pad=1) + bias for one sample, plus per-sample per-channel
    sum / sum-of-squares partials for train-mode BatchNorm.

    x_ref:     [1, L, Cin]    bf16 channels-last
    w_ref:     [Cin, 3*Cp]    bf16 tap-stacked weights, each tap zero-padded to Cp
                              (Cp = Cout rounded up to 128 -> lane-aligned tap slices)
    b_ref:     [1, Cp]        f32 zero-padded bias
    y_ref:     [1, L, Cout]   bf16 conv output (pre-BN); bf16 halves HBM traffic
    stats_ref: [1, 1, 2*Cout] f32 packed [sum | sum_sq] over L (taken in f32 pre-cast)
    """
    L = x_ref.shape[1]
    Cp = b_ref.shape[-1]
    Cout = y_ref.shape[-1]

    x = x_ref[0]                                                     # [L, Cin] bf16
    # One MXU matmul fuses all three taps; each tap owns a lane-aligned 128-wide slab.
    s = jnp.dot(x, w_ref[...], preferred_element_type=jnp.float32)   # [L, 3*Cp] f32
    s0 = s[:, :Cp]           # tap k=0: w[:,:,0].x[l] -> contributes to out[l+1]
    s1 = s[:, Cp:2 * Cp]     # tap k=1: w[:,:,1].x[l] -> contributes to out[l]
    s2 = s[:, 2 * Cp:]       # tap k=2: w[:,:,2].x[l] -> contributes to out[l-1]

    # Conv halo shifts as XLU sublane rotations + VPU masks for the zero padding at
    # l=0 / l=L-1 (positive shifts only; wrapped rows are masked to zero).
    row = lax.broadcasted_iota(jnp.int32, (L, Cp), 0)
    s0r = jnp.where(row == 0, 0.0, pltpu.roll(s0, shift=1, axis=0))
    s2r = jnp.where(row == L - 1, 0.0, pltpu.roll(s2, shift=L - 1, axis=0))

    y = s1 + b_ref[...] + s0r + s2r                                  # [L, Cp] f32
    y = y[:, :Cout]                                                  # drop lane padding

    y_ref[0] = y.astype(y_ref.dtype)
    stats_ref[0] = jnp.concatenate(
        [jnp.sum(y, axis=0, keepdims=True), jnp.sum(y * y, axis=0, keepdims=True)],
        axis=1)


# --------------------------------------------------------------------------- pass 2
def _bn_elu_pool_kernel(ypair_ref, scale_ref, shift_ref, o_ref):
    """BN affine (precomputed scale/shift) + ELU + AvgPool1d(2), stored NCL-native.

    ypair_ref: [1, TLo, 2*Cout] bf16  (pool pairs side by side on the lane axis)
    scale_ref / shift_ref: [1, Cout] f32
    o_ref:     [1, Cout, TLo]   f32   (in-kernel transpose -> lane-dense Lo stores)
    """
    Cout = scale_ref.shape[-1]
    yp = ypair_ref[0].astype(jnp.float32)                 # [TLo, 2*Cout]
    scale = scale_ref[...]
    shift = shift_ref[...]

    ya = yp[:, :Cout] * scale + shift                     # even member of each pool pair
    yb = yp[:, Cout:] * scale + shift                     # odd member

    # ELU(alpha=1), all elementwise work in f32 (v5e has no bf16 VPU/EUP).
    ya = jnp.where(ya > 0, ya, jnp.expm1(jnp.minimum(ya, 0.0)))
    yb = jnp.where(yb > 0, yb, jnp.expm1(jnp.minimum(yb, 0.0)))

    pooled = (ya + yb) * 0.5                              # [TLo, Cout] (plain VPU pool)
    o_ref[0] = jnp.transpose(pooled, (1, 0)).astype(o_ref.dtype)   # [Cout, TLo]


# --------------------------------------------------------------------------- wrapper
def cnn_block(x, w, b, gamma, beta):
    """x: [N, C_in, L] (PyTorch NCL). Returns [N, C_out, L//2] float32."""
    N, Cin, L = x.shape
    Cout = w.shape[0]
    assert w.shape == (Cout, Cin, 3)
    Lo = L // 2
    assert Lo >= 1, "AvgPool1d(2) needs L >= 2"
    Cp = _round_up(Cout, 128)    # per-tap lane padding so tap slices are free views

    # ---- wrapper-side layout / parameter prep (glue only) ----
    # TODO(synk): keep activations channels-last across the model so this NCL->NLC
    #             transpose of x leaves the hot path entirely.
    x_cl = jnp.transpose(x, (0, 2, 1)).astype(jnp.bfloat16)              # [N, L, Cin]
    # w[co, ci, k] -> w_all[ci, k*Cp + co] (zero-padded per tap).
    w_t = jnp.transpose(w, (1, 2, 0))                                     # [Cin, 3, Cout]
    w_all = jnp.pad(w_t, ((0, 0), (0, 0), (0, Cp - Cout))).reshape(Cin, 3 * Cp)
    w_all = w_all.astype(jnp.bfloat16)
    b_p = jnp.pad(b, (0, Cp - Cout)).reshape(1, Cp).astype(jnp.float32)

    # ---------------- pass 1: conv + BN partial statistics (grid over N) ----------------
    # TODO(synk): tile L (carrying the +/-1 halo row) in this pass for very large L*C so
    #             the per-sample block fits v7x's 64 MiB VMEM; and when Cin < 2*Cout,
    #             drop the y intermediate entirely by recomputing the conv in pass 2.
    p1_bytes = (L * Cin * 2 + Cin * 3 * Cp * 2 + Cp * 4        # x, w, b blocks
                + L * 3 * Cp * 4                               # f32 matmul result
                + L * Cout * 2 + 2 * Cout * 4)                 # y + stats blocks
    y, stats = pl.pallas_call(
        _conv_stats_kernel,
        grid=(N,),
        in_specs=[
            pl.BlockSpec((1, L, Cin), lambda n: (n, 0, 0)),
            pl.BlockSpec((Cin, 3 * Cp), lambda n: (0, 0)),
            pl.BlockSpec((1, Cp), lambda n: (0, 0)),
        ],
        out_specs=[
            pl.BlockSpec((1, L, Cout), lambda n: (n, 0, 0)),
            pl.BlockSpec((1, 1, 2 * Cout), lambda n: (n, 0, 0)),
        ],
        out_shape=(
            jax.ShapeDtypeStruct((N, L, Cout), jnp.bfloat16),
            jax.ShapeDtypeStruct((N, 1, 2 * Cout), jnp.float32),
        ),
        compiler_params=pltpu.CompilerParams(
            dimension_semantics=("parallel",),
            vmem_limit_bytes=_vmem_limit_bytes(p1_bytes),
        ),
    )(x_cl, w_all, b_p)

    # ---- BN finalize: tiny [Cout]-sized math, hoisted out of the pass-2 hot loop ----
    count = float(N * L)
    ssum = jnp.sum(stats[:, 0, :Cout], axis=0)                # [Cout]
    ssq = jnp.sum(stats[:, 0, Cout:], axis=0)                 # [Cout]
    mean = ssum / count
    # TODO(synk): use a mean-subtracted / Welford combine if conv outputs are badly
    #             centered (E[y^2]-E[y]^2 can cancel catastrophically in f32).
    var = jnp.maximum(ssq / count - mean * mean, 0.0)         # biased, train-mode BN
    scale = (gamma.astype(jnp.float32) * lax.rsqrt(var + 1e-5)).reshape(1, Cout)
    shift = beta.astype(jnp.float32).reshape(1, Cout) - mean.reshape(1, Cout) * scale

    # Expose the AvgPool pairs on the lane axis: [N, L, Cout] -> [N, Lo, 2*Cout]
    # (row-major metadata reshape; drops a trailing odd position like AvgPool1d(2)).
    ypair = y[:, :2 * Lo, :].reshape(N, Lo, 2 * Cout)

    # ---------------- pass 2: BN affine + ELU + AvgPool, NCL-native stores --------------
    tlo = _pick_tile(Lo)
    n_tiles = Lo // tlo
    p2_bytes = (tlo * 2 * Cout * 2 + 2 * Cout * 4 + Cout * tlo * 4)
    out = pl.pallas_call(
        _bn_elu_pool_kernel,
        grid=(N, n_tiles),
        in_specs=[
            pl.BlockSpec((1, tlo, 2 * Cout), lambda n, t: (n, t, 0)),
            pl.BlockSpec((1, Cout), lambda n, t: (0, 0)),
            pl.BlockSpec((1, Cout), lambda n, t: (0, 0)),
        ],
        out_specs=pl.BlockSpec((1, Cout, tlo), lambda n, t: (n, 0, t)),
        out_shape=jax.ShapeDtypeStruct((N, Cout, Lo), jnp.float32),
        compiler_params=pltpu.CompilerParams(
            dimension_semantics=("parallel", "parallel"),
            vmem_limit_bytes=_vmem_limit_bytes(p2_bytes),
        ),
    )(ypair, scale, shift)

    return out                                                # [N, Cout, Lo], NCL-native


# --------------------------------------------------------------------------- reference
def _reference(x, w, b, gamma, beta):
    """Pure-JAX f32 reference of the PyTorch CNNBlock forward (train-mode BN)."""
    N, Cin, L = x.shape
    xp = jnp.pad(x, ((0, 0), (0, 0), (1, 1)))
    y = b[None, :, None] + sum(
        jnp.einsum('ncl,oc->nol', xp[:, :, k:k + L], w[:, :, k]) for k in range(3))
    mean = y.mean(axis=(0, 2), keepdims=True)
    var = y.var(axis=(0, 2), keepdims=True)                   # biased variance
    yn = (y - mean) * lax.rsqrt(var + 1e-5)
    yn = yn * gamma[None, :, None] + beta[None, :, None]
    ye = jnp.where(yn > 0, yn, jnp.expm1(jnp.minimum(yn, 0.0)))
    Lo = L // 2
    return 0.5 * (ye[:, :, 0:2 * Lo:2] + ye[:, :, 1:2 * Lo:2])


# --------------------------------------------------------------------------- main
if __name__ == "__main__":
    key = jax.random.PRNGKey(0)
    kx, kw, kb = jax.random.split(key, 3)

    N, Cin, Cout, L = 2, 4, 8, 16
    x = jax.random.normal(kx, (N, Cin, L), jnp.float32)

    # Deterministic init mimicking PyTorch Conv1d defaults:
    # kaiming_uniform(a=sqrt(5)) -> U(-1/sqrt(fan_in), 1/sqrt(fan_in)), fan_in = Cin*k.
    fan_in = Cin * 3
    bound = 1.0 / (fan_in ** 0.5)
    w = jax.random.uniform(kw, (Cout, Cin, 3), jnp.float32, -bound, bound)
    b = jax.random.uniform(kb, (Cout,), jnp.float32, -bound, bound)
    gamma = jnp.ones((Cout,), jnp.float32)    # BatchNorm1d weight init
    beta = jnp.zeros((Cout,), jnp.float32)    # BatchNorm1d bias init

    out = cnn_block(x, w, b, gamma, beta)
    out = jax.block_until_ready(out)
    assert out.shape == (N, Cout, L // 2), out.shape
    assert bool(jnp.all(jnp.isfinite(out)))

    ref = _reference(x, w, b, gamma, beta)
    err = float(jnp.max(jnp.abs(out - ref)))
    assert err < 0.15, f"max abs err vs f32 reference: {err}"  # bf16 conv tolerance
    print("KERNEL_OK")
</pallas_src>

<mosaic_0001>
module attributes {stable_mosaic.version = 11 : i64} {
  func.func @_conv_stats_kernel(%arg0: i32, %arg1: memref<1x16x4xbf16, #tpu.memory_space<vmem>>, %arg2: memref<4x384xbf16, #tpu.memory_space<vmem>>, %arg3: memref<1x128xf32, #tpu.memory_space<vmem>>, %arg4: memref<1x16x8xbf16, #tpu.memory_space<vmem>>, %arg5: memref<1x1x16xf32, #tpu.memory_space<vmem>>) attributes {dimension_semantics = [#tpu.dimension_semantics<parallel>], iteration_bounds = array<i64: 2>, scalar_prefetch = 0 : i64, scratch_operands = 0 : i64, tpu.core_type = #tpu.core_type<tc>, window_params = [{transform_indices = @transform_0, window_bounds = array<i64: 1, 16, 4>}, {pipeline_mode = #tpu.pipeline_mode<synchronous>, transform_indices = @transform_1, window_bounds = array<i64: 4, 384>}, {pipeline_mode = #tpu.pipeline_mode<synchronous>, transform_indices = @transform_2, window_bounds = array<i64: 1, 128>}, {transform_indices = @transform_3, window_bounds = array<i64: 1, 16, 8>}, {transform_indices = @transform_4, window_bounds = array<i64: 1, 1, 16>}]} {
    %c0 = arith.constant 0 : index
    %c0_0 = arith.constant 0 : index
    %c0_1 = arith.constant 0 : index
    %0 = vector.load %arg1[%c0, %c0_0, %c0_1] : memref<1x16x4xbf16, #tpu.memory_space<vmem>>, vector<1x16x4xbf16>
    %1 = vector.shape_cast %0 : vector<1x16x4xbf16> to vector<16x4xbf16>
    %c0_2 = arith.constant 0 : index
    %c0_3 = arith.constant 0 : index
    %2 = vector.load %arg2[%c0_2, %c0_3] : memref<4x384xbf16, #tpu.memory_space<vmem>>, vector<4x384xbf16>
    %cst = arith.constant dense<0.000000e+00> : vector<16x384xf32>
    %3 = tpu.matmul %1, %2, %cst {dimension_numbers = #tpu.dot_dimension_numbers<[1], [0], [0], [1], [0, 0, 1, 1], [], []>} : vector<16x4xbf16>, vector<4x384xbf16>, vector<16x384xf32> -> vector<16x384xf32>
    %4 = vector.extract_strided_slice %3 {offsets = [0, 0], sizes = [16, 128], strides = [1, 1]} : vector<16x384xf32> to vector<16x128xf32>
    %5 = vector.extract_strided_slice %3 {offsets = [0, 128], sizes = [16, 128], strides = [1, 1]} : vector<16x384xf32> to vector<16x128xf32>
    %6 = vector.extract_strided_slice %3 {offsets = [0, 256], sizes = [16, 128], strides = [1, 1]} : vector<16x384xf32> to vector<16x128xf32>
    %7 = tpu.iota {dimensions = array<i32: 0>} : vector<16x128xi32>
    %c0_i32 = arith.constant 0 : i32
    %8 = vector.broadcast %c0_i32 : i32 to vector<16x128xi32>
    %9 = arith.cmpi eq, %7, %8 : vector<16x128xi32>
    %c1_i32 = arith.constant 1 : i32
    %10 = tpu.dynamic_rotate %4 by %c1_i32 dim 0 : vector<16x128xf32>, i32 -> vector<16x128xf32>
    %cst_4 = arith.constant 0.000000e+00 : f32
    %11 = vector.broadcast %cst_4 : f32 to vector<16x128xf32>
    %12 = arith.select %9, %11, %10 : vector<16x128xi1>, vector<16x128xf32>
    %c15_i32 = arith.constant 15 : i32
    %13 = vector.broadcast %c15_i32 : i32 to vector<16x128xi32>
    %14 = arith.cmpi eq, %7, %13 : vector<16x128xi32>
    %c15_i32_5 = arith.constant 15 : i32
    %15 = tpu.dynamic_rotate %6 by %c15_i32_5 dim 0 : vector<16x128xf32>, i32 -> vector<16x128xf32>
    %cst_6 = arith.constant 0.000000e+00 : f32
    %16 = vector.broadcast %cst_6 : f32 to vector<16x128xf32>
    %17 = arith.select %14, %16, %15 : vector<16x128xi1>, vector<16x128xf32>
    %c0_7 = arith.constant 0 : index
    %c0_8 = arith.constant 0 : index
    %18 = vector.load %arg3[%c0_7, %c0_8] : memref<1x128xf32, #tpu.memory_space<vmem>>, vector<1x128xf32>
    %19 = vector.broadcast %18 : vector<1x128xf32> to vector<16x128xf32>
    %20 = arith.addf %5, %19 : vector<16x128xf32>
    %21 = arith.addf %20, %12 : vector<16x128xf32>
    %22 = arith.addf %21, %17 : vector<16x128xf32>
    %23 = vector.extract_strided_slice %22 {offsets = [0, 0], sizes = [16, 8], strides = [1, 1]} : vector<16x128xf32> to vector<16x8xf32>
    %24 = arith.truncf %23 : vector<16x8xf32> to vector<16x8xbf16>
    %c0_9 = arith.constant 0 : index
    %c0_10 = arith.constant 0 : index
    %c0_11 = arith.constant 0 : index
    %25 = vector.load %arg4[%c0_9, %c0_10, %c0_11] : memref<1x16x8xbf16, #tpu.memory_space<vmem>>, vector<1x16x8xbf16>
    %26 = vector.shape_cast %25 : vector<1x16x8xbf16> to vector<16x8xbf16>
    %27 = vector.shape_cast %24 : vector<16x8xbf16> to vector<1x16x8xbf16>
    tpu.vector_store %arg4[%c0_9, %c0_10, %c0_11], %27 {strides = array<i32>} : memref<1x16x8xbf16, #tpu.memory_space<vmem>>, vector<1x16x8xbf16>,
    %cst_12 = arith.constant dense<0.000000e+00> : vector<8xf32>
    %28 = vector.multi_reduction <add>, %23, %cst_12 [0] : vector<16x8xf32> to vector<8xf32>
    %29 = vector.shape_cast %28 : vector<8xf32> to vector<1x8xf32>
    %30 = arith.mulf %23, %23 : vector<16x8xf32>
    %cst_13 = arith.constant dense<0.000000e+00> : vector<8xf32>
    %31 = vector.multi_reduction <add>, %30, %cst_13 [0] : vector<16x8xf32> to vector<8xf32>
    %32 = vector.shape_cast %31 : vector<8xf32> to vector<1x8xf32>
    %33 = tpu.concatenate %29, %32 in 1 : vector<1x8xf32>, vector<1x8xf32> -> vector<1x16xf32>
    %c0_14 = arith.constant 0 : index
    %c0_15 = arith.constant 0 : index
    %c0_16 = arith.constant 0 : index
    %34 = vector.load %arg5[%c0_14, %c0_15, %c0_16] : memref<1x1x16xf32, #tpu.memory_space<vmem>>, vector<1x1x16xf32>
    %35 = vector.shape_cast %34 : vector<1x1x16xf32> to vector<1x16xf32>
    %36 = vector.shape_cast %33 : vector<1x16xf32> to vector<1x1x16xf32>
    tpu.vector_store %arg5[%c0_14, %c0_15, %c0_16], %36 {strides = array<i32>} : memref<1x1x16xf32, #tpu.memory_space<vmem>>, vector<1x1x16xf32>,
    return
  }
  func.func @transform_0(%arg0: i32) -> (i32, i32, i32) {
    %c0_i32 = arith.constant 0 : i32
    %c0_i32_0 = arith.constant 0 : i32
    %c0_i32_1 = arith.constant 0 : i32
    return %arg0, %c0_i32, %c0_i32_0 : i32, i32, i32
  }
  func.func @transform_1(%arg0: i32) -> (i32, i32) {
    %c0_i32 = arith.constant 0 : i32
    %c0_i32_0 = arith.constant 0 : i32
    %c0_i32_1 = arith.constant 0 : i32
    return %c0_i32, %c0_i32_0 : i32, i32
  }
  func.func @transform_2(%arg0: i32) -> (i32, i32) {
    %c0_i32 = arith.constant 0 : i32
    %c0_i32_0 = arith.constant 0 : i32
    %c0_i32_1 = arith.constant 0 : i32
    return %c0_i32, %c0_i32_0 : i32, i32
  }
  func.func @transform_3(%arg0: i32) -> (i32, i32, i32) {
    %c0_i32 = arith.constant 0 : i32
    %c0_i32_0 = arith.constant 0 : i32
    %c0_i32_1 = arith.constant 0 : i32
    return %arg0, %c0_i32, %c0_i32_0 : i32, i32, i32
  }
  func.func @transform_4(%arg0: i32) -> (i32, i32, i32) {
    %c0_i32 = arith.constant 0 : i32
    %c0_i32_0 = arith.constant 0 : i32
    %c0_i32_1 = arith.constant 0 : i32
    return %arg0, %c0_i32, %c0_i32_0 : i32, i32, i32
  }
}

</mosaic_0001>

<llo_original>
// kernel: tpu_custom_call.1
$region0: #{tpu_custom_call.1}
  #allocation0 [shape = 'u32[]', space=smem, size = 0x4, offset = 0x4, fixed_abs, tag = 'smem constant byte address 0x4 - core index']
  #allocation1 [shape = 'u32[144,128]{1,0:T(1,128)}', space=vmem, size = 0x12000, scoped, tag = 'internal scratch']
  %s0 = inlined_call_operand.vmem [shape: bf16[2,16,4], index: 0, kind: input, shape index: {}]
  %s1 = inlined_call_operand.vmem [shape: bf16[4,384], index: 1, kind: input, shape index: {}]
  %s2 = inlined_call_operand.vmem [shape: f32[1,128], index: 2, kind: input, shape index: {}]
  %s3 = inlined_call_operand.vmem [shape: bf16[2,16,8], index: 3, kind: output, shape index: {0}]
  %s4 = inlined_call_operand.hbm [shape: f32[2,1,16], index: 4, kind: output, shape index: {1}]
  %5 = xla_tuple %s3, %s4
  %s6 = sld [smem:[#allocation0]]
  $region53: #{tpu_custom_call.1} parent=0
    _
  %s8 = ssub.s32 1, %s6
  %s9 = scalar_select 0, %s8, %s6
  $region1: #{tpu_custom_call.1} parent=0
    #allocation2 [shape = 'u8[1024]{0}', space=vmem, size = 0x400, scoped, tag = 'output window, operand 1']
    #allocation3 [shape = 's32[2]{0}', space=sflag, size = 0x8, scoped, tag = 'scoped memory for tpu_custom_call.1']
    %10 = vsyncpa [#allocation3], 0
    %s11 = scalar_lea.sflag [#allocation3], 1
    %12 = vsyncpa %s11, 0
    loop: start=0, step=1, limit=4
    $region2: #{tpu_custom_call.1} parent=1 // loop_pre_header
      _
    $region3: #{tpu_custom_call.1} parent=1 // loop_header
      %s14 = sphi 0, %s18
      %p15 = scmp.ge.s32.totalorder %s14, 4
      %s24 = sphi 0, %s26
      %s27 = sphi 0, %s24
      %s28 = sphi 0, %s27
      %s44 = sphi 0, %s28
      %s48 = sphi 0, %s48
      %s50 = sphi 0, %s48
      %s51 = sphi 0, %s50
      %s65 = sphi 0, %s51
      %s69 = sphi 0, %s69
      %s71 = sphi 0, %s69
      %s72 = sphi 0, %s71
      %s86 = sphi 0, %s72
      %s92 = sphi 0, %s94
      %s95 = sphi 0, %s92
      %s96 = sphi 0, %s95
      %s112 = sphi 0, %s96
      %s118 = sphi 0, %s120
      %s121 = sphi 0, %s118
      %s122 = sphi 0, %s121
      %s138 = sphi 0, %s122
    $region4: #{tpu_custom_call.1} parent=1 // loop_header_branch
      %17 = sbr.rel (%p15) target = $region8
    $region5: #{tpu_custom_call.1} parent=1 // loop_body
      %s19 = ssub.s32 %s14, 1
      %s20 = ssub.s32 %s14, 2
      %s21 = sadd.s32 %s14, 1
      %s22 = ssub.s32 %s14, %s21
      %p23 = scmp.eq.s32.totalorder %s22, 0
      %s25 = sadd.s32 %s24, 1
      %s26 = scalar_select %p23, %s24, %s25
      %p29 = pneg %p23
      %p30 = scmp.eq.s32.totalorder %s14, 1
      %p31 = por %p29, %p30
      %p32 = scmp.ne.s32.totalorder %s24, %s27
      %p33 = scmp.eq.s32.totalorder %s14, 0
      %p34 = por %p32, %p33
      %p35 = scmp.ne.s32.totalorder %s24, %s27
      %p36 = scmp.eq.s32.totalorder %s19, 1
      %p37 = por %p35, %p36
      %p38 = scmp.ne.s32.totalorder %s27, %s28
      %p39 = scmp.eq.s32.totalorder %s19, 0
      %p40 = por %p38, %p39
      %p41 = scmp.ne.s32.totalorder %s27, %s28
      %p42 = scmp.eq.s32.totalorder %s20, 1
      %p43 = por %p41, %p42
      %p45 = scmp.ne.s32.totalorder %s28, %s44
      %p46 = scmp.eq.s32.totalorder %s20, 0
      %p47 = por %p45, %p46
      %s49 = sadd.s32 %s48, 1
      %p52 = scmp.eq.s32.totalorder %s14, 1
      %p53 = scmp.ne.s32.totalorder %s48, %s50
      %p54 = scmp.eq.s32.totalorder %s14, 0
      %p55 = por %p53, %p54
      %p56 = scmp.ne.s32.totalorder %s48, %s50
      %p57 = scmp.eq.s32.totalorder %s19, 1
      %p58 = por %p56, %p57
      %p59 = scmp.ne.s32.totalorder %s50, %s51
      %p60 = scmp.eq.s32.totalorder %s19, 0
      %p61 = por %p59, %p60
      %p62 = scmp.ne.s32.totalorder %s50, %s51
      %p63 = scmp.eq.s32.totalorder %s20, 1
      %p64 = por %p62, %p63
      %p66 = scmp.ne.s32.totalorder %s51, %s65
      %p67 = scmp.eq.s32.totalorder %s20, 0
      %p68 = por %p66, %p67
      %s70 = sadd.s32 %s69, 1
      %p73 = scmp.eq.s32.totalorder %s14, 1
      %p74 = scmp.ne.s32.totalorder %s69, %s71
      %p75 = scmp.eq.s32.totalorder %s14, 0
      %p76 = por %p74, %p75
      %p77 = scmp.ne.s32.totalorder %s69, %s71
      %p78 = scmp.eq.s32.totalorder %s19, 1
      %p79 = por %p77, %p78
      %p80 = scmp.ne.s32.totalorder %s71, %s72
      %p81 = scmp.eq.s32.totalorder %s19, 0
      %p82 = por %p80, %p81
      %p83 = scmp.ne.s32.totalorder %s71, %s72
      %p84 = scmp.eq.s32.totalorder %s20, 1
      %p85 = por %p83, %p84
      %p87 = scmp.ne.s32.totalorder %s72, %s86
      %p88 = scmp.eq.s32.totalorder %s20, 0
      %p89 = por %p87, %p88
      %s90 = ssub.s32 %s14, %s21
      %p91 = scmp.eq.s32.totalorder %s90, 0
      %s93 = sadd.s32 %s92, 1
      %s94 = scalar_select %p91, %s92, %s93
      %p97 = pneg %p91
      %p98 = scmp.eq.s32.totalorder %s14, 1
      %p99 = por %p97, %p98
      %p100 = scmp.ne.s32.totalorder %s92, %s95
      %p101 = scmp.eq.s32.totalorder %s14, 0
      %p102 = por %p100, %p101
      %p103 = scmp.ne.s32.totalorder %s92, %s95
      %p104 = scmp.eq.s32.totalorder %s19, 1
      %p105 = por %p103, %p104
      %p106 = scmp.ne.s32.totalorder %s95, %s96
      %p107 = scmp.eq.s32.totalorder %s19, 0
      %p108 = por %p106, %p107
      %p109 = scmp.ne.s32.totalorder %s95, %s96
      %p110 = scmp.eq.s32.totalorder %s20, 1
      %p111 = por %p109, %p110
      %p113 = scmp.ne.s32.totalorder %s96, %s112
      %p114 = scmp.eq.s32.totalorder %s20, 0
      %p115 = por %p113, %p114
      %s116 = ssub.s32 %s14, %s21
      %p117 = scmp.eq.s32.totalorder %s116, 0
      %s119 = sadd.s32 %s118, 1
      %s120 = scalar_select %p117, %s118, %s119
      %p123 = pneg %p117
      %p124 = scmp.eq.s32.totalorder %s14, 1
      %p125 = por %p123, %p124
      %p126 = scmp.ne.s32.totalorder %s118, %s121
      %p127 = scmp.eq.s32.totalorder %s14, 0
      %p128 = por %p126, %p127
      %p129 = scmp.ne.s32.totalorder %s118, %s121
      %p130 = scmp.eq.s32.totalorder %s19, 1
      %p131 = por %p129, %p130
      %p132 = scmp.ne.s32.totalorder %s121, %s122
      %p133 = scmp.eq.s32.totalorder %s19, 0
      %p134 = por %p132, %p133
      %p135 = scmp.ne.s32.totalorder %s121, %s122
      %p136 = scmp.eq.s32.totalorder %s20, 1
      %p137 = por %p135, %p136
      %p139 = scmp.ne.s32.totalorder %s122, %s138
      %p140 = scmp.eq.s32.totalorder %s20, 0
      %p141 = por %p139, %p140
      %p142 = scmp.le.s32.totalorder 1, %s14
      %p143 = scmp.lt.s32.totalorder %s14, 3
      %p144 = pnand %p142, %p143
      %p145 = pneg %p144
      // Predicated region
      $region9: #{tpu_custom_call.1} parent=5 // pred_check
        _
      $region10: #{tpu_custom_call.1} parent=5 // pred_check_branch
        %147 = sbr.rel (%p144) target = $region12
      $region11: #{tpu_custom_call.1} parent=5 // pred_region
        %s148 = ssub.s32 %s14, 1
        // Predicated region
        $region13: #{tpu_custom_call.1} parent=11 // pred_check
          %p149 = pneg %p61
        $region14: #{tpu_custom_call.1} parent=11 // pred_check_branch
          %151 = sbr.rel (%p149) target = $region16
        $region15: #{tpu_custom_call.1} parent=11 // pred_region
          _
        $region16: #{tpu_custom_call.1} parent=11 // pred_fallthru
          _
        // Predicated region
        $region17: #{tpu_custom_call.1} parent=11 // pred_check
          %p152 = pneg %p82
        $region18: #{tpu_custom_call.1} parent=11 // pred_check_branch
          %154 = sbr.rel (%p152) target = $region20
        $region19: #{tpu_custom_call.1} parent=11 // pred_region
          _
        $region20: #{tpu_custom_call.1} parent=11 // pred_fallthru
          _
      $region12: #{tpu_custom_call.1} parent=5 // pred_fallthru
        _
      %p155 = scmp.lt.s32.totalorder %s14, 2
      // Predicated region
      $region21: #{tpu_custom_call.1} parent=5 // pred_check
        %p156 = pneg %p155
      $region22: #{tpu_custom_call.1} parent=5 // pred_check_branch
        %158 = sbr.rel (%p156) target = $region24
      $region23: #{tpu_custom_call.1} parent=5 // pred_region
        // Predicated region
        $region25: #{tpu_custom_call.1} parent=23 // pred_check
          %p159 = pneg %p34
        $region26: #{tpu_custom_call.1} parent=23 // pred_check_branch
          %161 = sbr.rel (%p159) target = $region28
        $region27: #{tpu_custom_call.1} parent=23 // pred_region
          %p162 = scmp.lt.s32.totalorder %s14, 1
          %s163 = scalar_select %p162, %s14, 1
          %s164 = smul.addr %s163, 2
          %s165 = smul.addr %s164, 4
          %s166 = scalar_lea.vmem %s0, %s165
        $region28: #{tpu_custom_call.1} parent=23 // pred_fallthru
          _
      $region24: #{tpu_custom_call.1} parent=5 // pred_fallthru
        _
      %p167 = scmp.le.s32.totalorder 1, %s14
      %p168 = scmp.lt.s32.totalorder %s14, 3
      %p169 = pnand %p167, %p168
      %p170 = pneg %p169
      // Predicated region
      $region29: #{tpu_custom_call.1} parent=5 // pred_check
        _
      $region30: #{tpu_custom_call.1} parent=5 // pred_check_branch
        %172 = sbr.rel (%p169) target = $region32
      $region31: #{tpu_custom_call.1} parent=5 // pred_region
        %s173 = ssub.s32 %s14, 1
        %p174 = scmp.lt.s32.totalorder %s19, 1
        %s175 = scalar_select %p174, %s19, 1
        %s176 = smul.addr %s175, 2
        %s177 = smul.addr %s176, 4
        %s178 = scalar_lea.vmem %s0, %s177
        %p179 = pneg %p40
        %p180 = pneg %p37
        %p181 = pneg %p61
        %p182 = pneg %p58
        %p183 = pneg %p82
        %p184 = pneg %p79
        %p185 = pneg %p108
        %p186 = pneg %p105
        %p187 = scmp.lt.s32.totalorder %s19, 1
        %s188 = scalar_select %p187, %s19, 1
        %s189 = smul.addr %s188, 2
        %s190 = smul.addr %s189, 4
        %s191 = scalar_lea.vmem %s3, %s190
        %p192 = pneg %p134
        %p193 = pneg %p131
        %s194 = sand.u32 %s121, 1
        %s195 = scalar_lea.sflag [#allocation3], %s194
        %s196 = sand.u32 %s121, 1
        %s197 = scalar_lea.vmem [#allocation2], %s196
        %p198 = scmp.lt.s32.totalorder %s19, 1
        %s199 = scalar_select %p198, %s19, 1
        %s200 = smul.addr %s199, 2
        %s201 = smul.addr %s200, 4
        %s202 = scalar_lea.vmem %s0, %s201
        %p203 = scmp.lt.s32.totalorder %s19, 1
        %s204 = scalar_select %p203, %s19, 1
        %s205 = smul.addr %s204, 2
        %s206 = smul.addr %s205, 4
        %s207 = scalar_lea.vmem %s3, %s206
        %v209 = vld [vmem:[%s202] sm:$0xf]
        %v210 = vld [vmem:[%s202 + $0x4] sm:$0xf]
        %v211 = vld [vmem:[%s1] sm:$0x3f]
        %v214 = vunpack.c.l.b16 %v209
        %v215 = vunpack.c.l.b16 %v210
        %v216 = vpack.c.b16 %v215, %v214
        %v218 = vcombine.high %v211, %v211
        %v220 = vunpack.c.l.s4 1983009808
        %v221 = vunpack.c.0.s8 %v220
        %v222 = vlaneseq
        %v223 = vshrl.u32 %v222, 7
        %v224 = vsub.s32 %v221, %v223
        %v225 = vrot.slane %v211, %v224
        %v227 = vunpack.c.l.s4 1983009808
        %v228 = vunpack.c.0.s8 %v227
        %v229 = vlaneseq
        %v230 = vshrl.u32 %v229, 7
        %v231 = vsub.s32 %v228, %v230
        %v232 = vrot.slane %v218, %v231
        %v233 = vcombine.high %v225, %v225
        %vm234 = vcmask 31744
        %v236 = vsel %vm234, %v216, 0
        %vm238 = vcmask 1041408
        %v240 = vsel %vm238, %v225, 0
        %v243 = vsel %vm238, %v233, 0
        %v246 = vsel %vm238, %v232, 0
        %248 = vmatprep.subr.bf16.mxu0 %v243
        %249 = vmatpush1.bf16.msra.mxu0 %v240
        %250 = vmatprep.subr.bf16.mxu0 0
        %251 = vmatpush1.bf16.msra.mxu0 0
        %252 = vmatprep.subr.bf16.mxu0 0
        %253 = vmatpush1.bf16.msra.mxu0 0
        %254 = vmatprep.subr.bf16.mxu0 0
        %255 = vmatpush1.bf16.msra.mxu0 0
        %256 = vmatprep.subr.bf16.mxu0 0
        %257 = vmatpush1.bf16.msra.mxu0 0
        %258 = vmatprep.subr.bf16.mxu0 0
        %259 = vmatpush1.bf16.msra.mxu0 0
        %260 = vmatprep.subr.bf16.mxu0 0
        %261 = vmatpush1.bf16.msra.mxu0 0
        %262 = vmatprep.subr.bf16.mxu0 0
        %263 = vmatpush1.bf16.msra.mxu0 0
        %264 = vmatprep.subr.bf16.mxu0 0
        %265 = vmatpush1.bf16.msra.mxu0 0
        %266 = vmatprep.subr.bf16.mxu0 0
        %267 = vmatpush1.bf16.msra.mxu0 0
        %268 = vmatprep.subr.bf16.mxu0 0
        %269 = vmatpush1.bf16.msra.mxu0 0
        %270 = vmatprep.subr.bf16.mxu0 0
        %271 = vmatpush1.bf16.msra.mxu0 0
        %272 = vmatprep.subr.bf16.mxu0 0
        %273 = vmatpush1.bf16.msra.mxu0 0
        %274 = vmatprep.subr.bf16.mxu0 0
        %275 = vmatpush1.bf16.msra.mxu0 0
        %276 = vmatprep.subr.bf16.mxu0 0
        %277 = vmatpush1.bf16.msra.mxu0 0
        %278 = vmatprep.subr.bf16.mxu0 0
        %279 = vmatpush1.bf16.msra.mxu0 0
        %280 = vmatprep.mubr.bf16.mxu0 0
        %281 = vmatmul.mubr.bf16.gmra.mrb[0].mxu0 %v236
        %v282 = vpop.f32.mrb[0].mxu0
        %v283 = vadd.f32 0.0, %v282
        %v284 = vpop.f32.mrb[0].mxu0
        %v285 = vadd.f32 0.0, %v284
        %v286 = vpop.f32.mrb[0].mxu0
        %v287 = vadd.f32 0.0, %v286
        %v288 = vpop.f32.mrb[0].mxu0
        %v289 = vadd.f32 0.0, %v288
        %290 = vdwg.mxu0
        %291 = vmatprep.subr.bf16.mxu0 0
        %292 = vmatpush1.bf16.msra.mxu0 %v246
        %293 = vmatprep.subr.bf16.mxu0 0
        %294 = vmatpush1.bf16.msra.mxu0 0
        %295 = vmatprep.subr.bf16.mxu0 0
        %296 = vmatpush1.bf16.msra.mxu0 0
        %297 = vmatprep.subr.bf16.mxu0 0
        %298 = vmatpush1.bf16.msra.mxu0 0
        %299 = vmatprep.subr.bf16.mxu0 0
        %300 = vmatpush1.bf16.msra.mxu0 0
        %301 = vmatprep.subr.bf16.mxu0 0
        %302 = vmatpush1.bf16.msra.mxu0 0
        %303 = vmatprep.subr.bf16.mxu0 0
        %304 = vmatpush1.bf16.msra.mxu0 0
        %305 = vmatprep.subr.bf16.mxu0 0
        %306 = vmatpush1.bf16.msra.mxu0 0
        %307 = vmatprep.subr.bf16.mxu0 0
        %308 = vmatpush1.bf16.msra.mxu0 0
        %309 = vmatprep.subr.bf16.mxu0 0
        %310 = vmatpush1.bf16.msra.mxu0 0
        %311 = vmatprep.subr.bf16.mxu0 0
        %312 = vmatpush1.bf16.msra.mxu0 0
        %313 = vmatprep.subr.bf16.mxu0 0
        %314 = vmatpush1.bf16.msra.mxu0 0
        %315 = vmatprep.subr.bf16.mxu0 0
        %316 = vmatpush1.bf16.msra.mxu0 0
        %317 = vmatprep.subr.bf16.mxu0 0
        %318 = vmatpush1.bf16.msra.mxu0 0
        %319 = vmatprep.subr.bf16.mxu0 0
        %320 = vmatpush1.bf16.msra.mxu0 0
        %321 = vmatprep.subr.bf16.mxu0 0
        %322 = vmatpush1.bf16.msra.mxu0 0
        %323 = vmatprep.mubr.bf16.mxu0 0
        %324 = vmatmul.mubr.bf16.gmra.mrb[0].mxu0 %v236
        %v325 = vpop.f32.mrb[0].mxu0
        %v326 = vadd.f32 0.0, %v325
        %v327 = vpop.f32.mrb[0].mxu0
        %v328 = vpop.f32.mrb[0].mxu0
        %v329 = vadd.f32 0.0, %v328
        %v330 = vpop.f32.mrb[0].mxu0
        %331 = vdwg.mxu0
        %v332 = vlaneseq
        %v333 = vshrl.u32 %v332, 7
        %v334 = vadd.s32 %v333, 8
        %vm335 = vcmp.eq.s32.totalorder %v333, 0
        %vm336 = vcmp.eq.s32.totalorder %v334, 0
        %v337 = vrot.slane %v283, 7
        %v338 = vrot.slane %v287, 7
        %vm339 = vcmp.lt.s32.totalorder %v333, 1
        %v340 = vsel %vm339, %v337, %v338
        %v341 = vsel %vm339, %v338, %v337
        %v342 = vsel %vm335, 0.0, %v341
        %v343 = vsel %vm336, 0.0, %v340
        %vm344 = vcmp.eq.s32.totalorder %v333, 15
        %vm345 = vcmp.eq.s32.totalorder %v334, 15
        %v346 = vrot.slane %v326, 1
        %v347 = vrot.slane %v329, 1
        %vm348 = vcmp.lt.s32.totalorder %v333, 7
        %v349 = vsel %vm348, %v346, %v347
        %v350 = vsel %vm348, %v347, %v346
        %v351 = vsel %vm344, 0.0, %v349
        %v352 = vsel %vm345, 0.0, %v350
        %v353 = vld [vmem:[%s2] sm:$0x1]
        %v355 = vlaneseq
        %v356 = vshrl.u32 %v355, 7
        %v357 = vsub.s32 0, %v356
        %v358 = vrot.slane %v353, %v357
        %v360 = vadd.f32 %v285, %v358
        %v361 = vadd.f32 %v289, %v358
        %v362 = vadd.f32 %v360, %v342
        %v363 = vadd.f32 %v361, %v343
        %v364 = vadd.f32 %v362, %v351
        %v365 = vadd.f32 %v363, %v352
        %v366 = vpack.c.bf16 %v365, %v364
        %v368 = vunpack.c.l.b16 %v366
        %v369 = vunpack.c.h.b16 %v366
        %v370 = vpack.c.b16 %v368, %v368
        %v371 = vpack.c.b16 %v369, %v369
        %vm374 = vcmask 60416
        %375 = vst.msk [vmem:[%s207] sm:$0xf] %vm374, %v370
        %376 = vst.msk [vmem:[%s207 + $0x4] sm:$0xf] %vm374, %v371
        %vm377 = vcmask 64512
        %v378 = vsel %vm377, %v364, 0.0
        %v379 = vsel %vm377, %v365, 0.0
        %v380 = vadd.f32 %v378, %v379
        %v381 = vrot.slane %v380, 4
        %v382 = vadd.f32 %v380, %v381
        %v383 = vrot.slane %v382, 2
        %v384 = vadd.f32 %v382, %v383
        %v385 = vrot.slane %v384, 1
        %v386 = vadd.f32 %v384, %v385
        %v387 = vmul.f32 %v364, %v364
        %v388 = vmul.f32 %v365, %v365
        %v389 = vsel %vm377, %v387, 0.0
        %v390 = vsel %vm377, %v388, 0.0
        %v391 = vadd.f32 %v389, %v390
        %v392 = vrot.slane %v391, 4
        %v393 = vadd.f32 %v391, %v392
        %v394 = vrot.slane %v393, 2
        %v395 = vadd.f32 %v393, %v394
        %v396 = vrot.slane %v395, 1
        %v397 = vadd.f32 %v395, %v396
        %399 = vrot.lane.b32.xlu0 %v397, 8
        %v400 = vpop.permute.xlu0 %399
        %v402 = vsel %vm377, %v386, %v400
        %vm403 = vcmask 122880
        %404 = vst.msk [vmem:[%s197] sm:$0x1] %vm403, %v402
        %p405 = scmp.lt.s32.totalorder %s19, 1
        %s406 = scalar_select %p405, %s19, 1
        %s407 = smul.addr %s406, 2
        %s408 = smul.addr %s407, 4
        %s409 = scalar_lea.vmem %s3, %s408
        %s410 = sand.u32 %s121, 1
        %s411 = scalar_lea.sflag [#allocation3], %s410
        %s412 = sand.u32 %s121, 1
        %s413 = scalar_lea.vmem [#allocation2], %s412
        // Predicated region
        $region33: #{tpu_custom_call.1} parent=31 // pred_check
          %p414 = pneg %p105
        $region34: #{tpu_custom_call.1} parent=31 // pred_check_branch
          %416 = sbr.rel (%p414) target = $region36
        $region35: #{tpu_custom_call.1} parent=31 // pred_region
          _
        $region36: #{tpu_custom_call.1} parent=31 // pred_fallthru
          _
        // Predicated region
        $region37: #{tpu_custom_call.1} parent=31 // pred_check
          %p417 = pneg %p131
        $region38: #{tpu_custom_call.1} parent=31 // pred_check_branch
          %419 = sbr.rel (%p417) target = $region40
        $region39: #{tpu_custom_call.1} parent=31 // pred_region
          %s421 = ssub.s32 16, 16
          %422 = vsyncadd %s411, %s421
          %s423 = smul.addr %s19, 16
          %s424 = scalar_lea.hbm %s4, %s423
          %s426 = sshll.u32 %s413, 4
          %s427 = int_to_ptr.vmem [resolvable:$true] %s426
          %429 = dma.vmem_to_hbm [thread:$0]  %s427, 16, %s424, %s411
        $region40: #{tpu_custom_call.1} parent=31 // pred_fallthru
          _
      $region32: #{tpu_custom_call.1} parent=5 // pred_fallthru
        _
      %p430 = scmp.le.s32.totalorder 2, %s14
      // Predicated region
      $region41: #{tpu_custom_call.1} parent=5 // pred_check
        %p431 = pneg %p430
      $region42: #{tpu_custom_call.1} parent=5 // pred_check_branch
        %433 = sbr.rel (%p431) target = $region44
      $region43: #{tpu_custom_call.1} parent=5 // pred_region
        %s434 = ssub.s32 %s14, 2
        // Predicated region
        $region45: #{tpu_custom_call.1} parent=43 // pred_check
          %p435 = pneg %p111
        $region46: #{tpu_custom_call.1} parent=43 // pred_check_branch
          %437 = sbr.rel (%p435) target = $region48
        $region47: #{tpu_custom_call.1} parent=43 // pred_region
          %p438 = scmp.lt.s32.totalorder %s20, 1
          %s439 = scalar_select %p438, %s20, 1
          %s440 = smul.addr %s439, 2
          %s441 = smul.addr %s440, 4
          %s442 = scalar_lea.vmem %s3, %s441
        $region48: #{tpu_custom_call.1} parent=43 // pred_fallthru
          _
        // Predicated region
        $region49: #{tpu_custom_call.1} parent=43 // pred_check
          %p443 = pneg %p137
        $region50: #{tpu_custom_call.1} parent=43 // pred_check_branch
          %445 = sbr.rel (%p443) target = $region52
        $region51: #{tpu_custom_call.1} parent=43 // pred_region
          %s446 = sand.u32 %s122, 1
          %s447 = scalar_lea.sflag [#allocation3], %s446
          %s448 = sand.u32 %s122, 1
          %s449 = scalar_lea.vmem [#allocation2], %s448
          %450 = dma.done %s447, 16
        $region52: #{tpu_custom_call.1} parent=43 // pred_fallthru
          _
      $region44: #{tpu_custom_call.1} parent=5 // pred_fallthru
        _
    $region6: #{tpu_custom_call.1} parent=1 // loop_footer
      %s18 = sadd.s32 1, %s14
    $region7: #{tpu_custom_call.1} parent=1 // loop_footer_branch
      %13 = sbr.rel target = $region3
    $region8: #{tpu_custom_call.1} parent=1 // loop_exit
      _
    %451 = vsyncpa [#allocation3], 1
    %s452 = scalar_lea.sflag [#allocation3], 1
    %453 = vsyncpa %s452, 1

</llo_original>
